<compile_context>
chip_gen: v7x
topology: tpu7x:2x2x1
jax: 0.10.0
libtpu: 0.0.40
codegen_flags: <defaults>
</compile_context>

<pallas_src>
import numpy as np

import jax
import jax.numpy as jnp
from jax.experimental import pallas as pl
from jax.experimental.pallas import tpu as pltpu

# ----- "args" of the PyTorch module (small, deterministic, in-script) -----
EMBED_NUM = 100            # args.embed_num
EMBED_DIM = 32             # args.embed_dim
KERNEL_NUM = 8             # args.kernel_num
KERNEL_SIZES = (3, 4, 5)   # args.kernel_sizes
CLASS_NUM = 4              # args.class_num
DROPOUT = 0.5              # args.dropout (inference -> identity)
BATCH = 2
SEQ_LEN = 16

KMAX = max(KERNEL_SIZES)                     # 5
NC = len(KERNEL_SIZES) * KERNEL_NUM          # 24 stacked conv output channels
LOUT_PAD = 16                                # (SEQ_LEN - min(k) + 1) = 14 -> 8-mult pad
L_PAD = 24                                   # >= LOUT_PAD + KMAX - 1 = 20, 8-mult
OUT_PAD = 128                                # lane-dense width used everywhere
VOCAB_PAD = 128                              # embed-table rows padded 100 -> 128

# Row offsets inside the single packed (PARAM_ROWS, 128) f32 parameter buffer.
ROW_W = 0                                    # [0,160): stacked conv weights (lanes >= NC zero)
ROW_B = ROW_W + KMAX * EMBED_DIM             # 160: stacked conv bias row
ROW_FCW = ROW_B + 8                          # 168: (128,128) fc weight (rows >= NC zero)
ROW_FCB = ROW_FCW + OUT_PAD                  # 296: fc bias row
ROW_MASK = ROW_FCB + 8                       # 304: (LOUT_PAD,128) tail-validity mask
PARAM_ROWS = ROW_MASK + LOUT_PAD             # 320


def cnn_text_kernel(tok_ref, table_ref, par_ref, out_ref):
    """Fused one-hot embed gather + stacked im2col conv + relu + max + fc."""
    batch = out_ref.shape[0]
    l_pad = tok_ref.shape[1]

    # ---- 1) one-hot MXU embedding gather (replaces the 32 serialized
    #         scalar-driven sld->vld->vst chains of v2).  bf16 operands are
    #         exact here (one-hot is 0/1 row-select); f32 accumulation. ----
    tok = tok_ref[...]                                              # (B, L_PAD) int32
    one_hot = (jax.lax.broadcasted_iota(jnp.int32, (batch, l_pad, VOCAB_PAD), 2)
               == tok[:, :, None]).astype(jnp.bfloat16)
    emb = jax.lax.dot_general(
        one_hot, table_ref[...].astype(jnp.bfloat16),
        dimension_numbers=(((2,), (0,)), ((), ())),
        preferred_element_type=jnp.float32)                         # (B, L_PAD, D)
    # pad tokens are -1 -> all-zero one-hot row -> exact zero embedding.

    # ---- 2) shared im2col patches for all three branches ----
    patches = jnp.concatenate(
        [emb[:, j:j + LOUT_PAD, :] for j in range(KMAX)], axis=-1)  # (B, LOUT_PAD, KMAX*D)

    # ---- 3) ONE stacked conv matmul on the MXU (bf16 operands, f32 accum),
    #         output channel axis padded to 128 lanes (pad channels have zero
    #         weight/bias -> zero feature -> zero fc contribution) ----
    w_stack = par_ref[ROW_W:ROW_W + KMAX * EMBED_DIM, :].astype(jnp.bfloat16)
    b_stack = par_ref[ROW_B:ROW_B + 1, :]
    scores = jax.lax.dot_general(
        patches.astype(jnp.bfloat16), w_stack,
        dimension_numbers=(((2,), (0,)), ((), ())),
        preferred_element_type=jnp.float32)                         # (B, LOUT_PAD, 128)
    scores = jnp.maximum(scores + b_stack, 0.0)                     # bias + relu

    # ---- 4) static tail-validity mask (host-precomputed 0/1 constant living
    #         in the packed param buffer), then max-over-time.  Exact because
    #         relu output >= 0 and every branch has >= 1 valid position
    #         (SEQ_LEN >= max kernel size). ----
    mask = par_ref[ROW_MASK:ROW_MASK + LOUT_PAD, :]
    feats = jnp.max(scores * mask[None], axis=1)                    # (B, 128)

    # TODO(synk): nn.Dropout is identity at inference; training dropout unimplemented.

    # ---- 5) fc with lane-dense (128-wide) output; wrapper slices class_num ----
    fcw = par_ref[ROW_FCW:ROW_FCW + OUT_PAD, :].astype(jnp.bfloat16)
    fcb = par_ref[ROW_FCB:ROW_FCB + 1, :]
    out_ref[...] = (jnp.dot(feats.astype(jnp.bfloat16), fcw,
                            preferred_element_type=jnp.float32) + fcb)


def init_params(key):
    ks = jax.random.split(key, 3 + 2 * len(KERNEL_SIZES))
    embed_table = jax.random.normal(ks[0], (EMBED_NUM, EMBED_DIM), jnp.float32) * 0.1
    conv_ws, conv_bs = [], []
    for i, k in enumerate(KERNEL_SIZES):
        # torch Conv2d weight is (C, 1, k, D); stored here as (k, D, C)
        conv_ws.append(jax.random.normal(ks[1 + 2 * i],
                                         (k, EMBED_DIM, KERNEL_NUM), jnp.float32) * 0.05)
        conv_bs.append(jax.random.normal(ks[2 + 2 * i],
                                         (1, KERNEL_NUM), jnp.float32) * 0.05)
    fcw = jax.random.normal(ks[-2], (len(KERNEL_SIZES) * KERNEL_NUM, CLASS_NUM),
                            jnp.float32) * 0.05   # torch fc.weight.T
    fcb = jax.random.normal(ks[-1], (1, CLASS_NUM), jnp.float32) * 0.05
    return embed_table, conv_ws, conv_bs, fcw, fcb


def pack_params(params):
    """One-time repack of the module params into the fused-kernel layout."""
    embed_table, conv_ws, conv_bs, fcw, fcb = params

    # Stack the three conv weights along output channels, zero-padded to KMAX taps.
    w_cols = []
    for w, k in zip(conv_ws, KERNEL_SIZES):
        w_flat = np.asarray(w).reshape(k * EMBED_DIM, KERNEL_NUM)            # (k*D, C)
        w_cols.append(np.pad(w_flat, ((0, (KMAX - k) * EMBED_DIM), (0, 0))))
    w_stack = np.concatenate(w_cols, axis=1)                                 # (KMAX*D, NC)
    b_stack = np.concatenate([np.asarray(b) for b in conv_bs], axis=1)       # (1, NC)

    # Static per-branch tail-validity mask (depends only on SEQ_LEN / kernel sizes).
    mask = np.zeros((LOUT_PAD, NC), np.float32)
    for i, k in enumerate(KERNEL_SIZES):
        mask[:SEQ_LEN - k + 1, i * KERNEL_NUM:(i + 1) * KERNEL_NUM] = 1.0

    # One contiguous (PARAM_ROWS, 128) f32 buffer -> a single HBM->VMEM DMA.
    buf = np.zeros((PARAM_ROWS, OUT_PAD), np.float32)
    buf[ROW_W:ROW_W + KMAX * EMBED_DIM, :NC] = w_stack
    buf[ROW_B, :NC] = b_stack[0]
    buf[ROW_FCW:ROW_FCW + NC, :CLASS_NUM] = np.asarray(fcw)
    buf[ROW_FCB, :CLASS_NUM] = np.asarray(fcb)[0]
    buf[ROW_MASK:ROW_MASK + LOUT_PAD, :NC] = mask
    params_pack = jnp.asarray(buf)

    # Embed table row-padded to VOCAB_PAD (pad rows never selected by one-hot).
    table_pad = jnp.asarray(
        np.pad(np.asarray(embed_table), ((0, VOCAB_PAD - EMBED_NUM), (0, 0))))
    return table_pad, params_pack


def cnn_text_forward(tokens, packed):
    table_pad, params_pack = packed
    batch = tokens.shape[0]
    # Pad the token matrix to (B, L_PAD); pad id -1 -> zero embedding in-kernel.
    tok_pad = jnp.full((batch, L_PAD), -1, jnp.int32).at[:, :SEQ_LEN].set(
        tokens.astype(jnp.int32))

    vmem = lambda: pl.BlockSpec(memory_space=pltpu.MemorySpace.VMEM)
    out_padded = pl.pallas_call(
        cnn_text_kernel,
        out_shape=jax.ShapeDtypeStruct((batch, OUT_PAD), jnp.float32),
        in_specs=[vmem(), vmem(), vmem()],
        out_specs=vmem(),
    )(tok_pad, table_pad, params_pack)
    return out_padded[:, :CLASS_NUM]


def cnn_text_reference(tokens, params):
    """Pure-JAX reference mirroring the PyTorch forward (eval mode), f32."""
    embed_table, conv_ws, conv_bs, fcw, fcb = params
    emb = jnp.take(embed_table, tokens, axis=0)         # (B, L, D)
    feats = []
    for W, b, k in zip(conv_ws, conv_bs, KERNEL_SIZES):
        lout = SEQ_LEN - k + 1
        scores = sum(jnp.einsum('bld,dc->blc', emb[:, j:j + lout, :], W[j])
                     for j in range(k)) + b
        feats.append(jnp.max(jax.nn.relu(scores), axis=1))
    return jnp.concatenate(feats, axis=-1) @ fcw + fcb


if __name__ == "__main__":
    key = jax.random.PRNGKey(0)
    k_tok, k_par = jax.random.split(key)
    tokens = jax.random.randint(k_tok, (BATCH, SEQ_LEN), 0, EMBED_NUM,
                                dtype=jnp.int32)
    params = init_params(k_par)
    packed = pack_params(params)

    fwd = jax.jit(cnn_text_forward)
    out = jax.block_until_ready(fwd(tokens, packed))

    ref = cnn_text_reference(tokens, params)
    assert out.shape == (BATCH, CLASS_NUM), out.shape
    # bf16 MXU operands (f32 accumulation) vs the f32 reference -> 2e-3 tol.
    assert jnp.allclose(out, ref, rtol=2e-3, atol=2e-3), (out, ref)
    print("KERNEL_OK")
</pallas_src>

<mosaic_0001>
module attributes {stable_mosaic.version = 11 : i64} {
  func.func @cnn_text_kernel(%arg0: memref<2x24xi32, #tpu.memory_space<vmem>>, %arg1: memref<128x32xf32, #tpu.memory_space<vmem>>, %arg2: memref<320x128xf32, #tpu.memory_space<vmem>>, %arg3: memref<2x128xf32, #tpu.memory_space<vmem>>) attributes {dimension_semantics = [], scalar_prefetch = 0 : i64, scratch_operands = 0 : i64, tpu.core_type = #tpu.core_type<tc>} {
    %c0 = arith.constant 0 : index
    %c0_0 = arith.constant 0 : index
    %0 = vector.load %arg0[%c0, %c0_0] : memref<2x24xi32, #tpu.memory_space<vmem>>, vector<2x24xi32>
    %1 = tpu.iota {dimensions = array<i32: 2>} : vector<2x24x128xi32>
    %2 = vector.shape_cast %0 : vector<2x24xi32> to vector<2x24x1xi32>
    %3 = vector.broadcast %2 : vector<2x24x1xi32> to vector<2x24x128xi32>
    %4 = arith.cmpi eq, %1, %3 : vector<2x24x128xi32>
    %5 = arith.extui %4 : vector<2x24x128xi1> to vector<2x24x128xi32>
    %6 = arith.sitofp %5 : vector<2x24x128xi32> to vector<2x24x128xf32>
    %7 = arith.truncf %6 : vector<2x24x128xf32> to vector<2x24x128xbf16>
    %c0_1 = arith.constant 0 : index
    %c0_2 = arith.constant 0 : index
    %8 = vector.load %arg1[%c0_1, %c0_2] : memref<128x32xf32, #tpu.memory_space<vmem>>, vector<128x32xf32>
    %9 = arith.truncf %8 : vector<128x32xf32> to vector<128x32xbf16>
    %cst = arith.constant dense<0.000000e+00> : vector<2x24x32xf32>
    %10 = tpu.matmul %7, %9, %cst {dimension_numbers = #tpu.dot_dimension_numbers<[2], [0], [0, 1], [1], [0, 0, 0, 1, 1, 1], [], []>} : vector<2x24x128xbf16>, vector<128x32xbf16>, vector<2x24x32xf32> -> vector<2x24x32xf32>
    %11 = vector.extract_strided_slice %10 {offsets = [0, 0, 0], sizes = [2, 16, 32], strides = [1, 1, 1]} : vector<2x24x32xf32> to vector<2x16x32xf32>
    %12 = vector.extract_strided_slice %10 {offsets = [0, 1, 0], sizes = [2, 16, 32], strides = [1, 1, 1]} : vector<2x24x32xf32> to vector<2x16x32xf32>
    %13 = vector.extract_strided_slice %10 {offsets = [0, 2, 0], sizes = [2, 16, 32], strides = [1, 1, 1]} : vector<2x24x32xf32> to vector<2x16x32xf32>
    %14 = vector.extract_strided_slice %10 {offsets = [0, 3, 0], sizes = [2, 16, 32], strides = [1, 1, 1]} : vector<2x24x32xf32> to vector<2x16x32xf32>
    %15 = vector.extract_strided_slice %10 {offsets = [0, 4, 0], sizes = [2, 16, 32], strides = [1, 1, 1]} : vector<2x24x32xf32> to vector<2x16x32xf32>
    %16 = tpu.concatenate %11, %12, %13, %14, %15 in 2 : vector<2x16x32xf32>, vector<2x16x32xf32>, vector<2x16x32xf32>, vector<2x16x32xf32>, vector<2x16x32xf32> -> vector<2x16x160xf32>
    %c0_3 = arith.constant 0 : index
    %c0_4 = arith.constant 0 : index
    %17 = vector.load %arg2[%c0_3, %c0_4] : memref<320x128xf32, #tpu.memory_space<vmem>>, vector<160x128xf32>
    %18 = arith.truncf %17 : vector<160x128xf32> to vector<160x128xbf16>
    %c160 = arith.constant 160 : index
    %c0_5 = arith.constant 0 : index
    %19 = vector.load %arg2[%c160, %c0_5] : memref<320x128xf32, #tpu.memory_space<vmem>>, vector<1x128xf32>
    %20 = arith.truncf %16 : vector<2x16x160xf32> to vector<2x16x160xbf16>
    %cst_6 = arith.constant dense<0.000000e+00> : vector<2x16x128xf32>
    %21 = tpu.matmul %20, %18, %cst_6 {dimension_numbers = #tpu.dot_dimension_numbers<[2], [0], [0, 1], [1], [0, 0, 0, 1, 1, 1], [], []>} : vector<2x16x160xbf16>, vector<160x128xbf16>, vector<2x16x128xf32> -> vector<2x16x128xf32>
    %22 = vector.shape_cast %19 : vector<1x128xf32> to vector<1x1x128xf32>
    %23 = vector.broadcast %22 : vector<1x1x128xf32> to vector<2x16x128xf32>
    %24 = arith.addf %21, %23 : vector<2x16x128xf32>
    %cst_7 = arith.constant 0.000000e+00 : f32
    %25 = vector.broadcast %cst_7 : f32 to vector<2x16x128xf32>
    %26 = arith.maximumf %24, %25 : vector<2x16x128xf32>
    %c304 = arith.constant 304 : index
    %c0_8 = arith.constant 0 : index
    %27 = vector.load %arg2[%c304, %c0_8] : memref<320x128xf32, #tpu.memory_space<vmem>>, vector<16x128xf32>
    %28 = vector.shape_cast %27 : vector<16x128xf32> to vector<1x16x128xf32>
    %29 = vector.broadcast %28 : vector<1x16x128xf32> to vector<2x16x128xf32>
    %30 = arith.mulf %26, %29 : vector<2x16x128xf32>
    %cst_9 = arith.constant dense<0xFF800000> : vector<2x128xf32>
    %31 = vector.multi_reduction <maximumf>, %30, %cst_9 [1] : vector<2x16x128xf32> to vector<2x128xf32>
    %c168 = arith.constant 168 : index
    %c0_10 = arith.constant 0 : index
    %32 = vector.load %arg2[%c168, %c0_10] : memref<320x128xf32, #tpu.memory_space<vmem>>, vector<128x128xf32>
    %33 = arith.truncf %32 : vector<128x128xf32> to vector<128x128xbf16>
    %c296 = arith.constant 296 : index
    %c0_11 = arith.constant 0 : index
    %34 = vector.load %arg2[%c296, %c0_11] : memref<320x128xf32, #tpu.memory_space<vmem>>, vector<1x128xf32>
    %35 = arith.truncf %31 : vector<2x128xf32> to vector<2x128xbf16>
    %cst_12 = arith.constant dense<0.000000e+00> : vector<2x128xf32>
    %36 = tpu.matmul %35, %33, %cst_12 {dimension_numbers = #tpu.dot_dimension_numbers<[1], [0], [0], [1], [0, 0, 1, 1], [], []>} : vector<2x128xbf16>, vector<128x128xbf16>, vector<2x128xf32> -> vector<2x128xf32>
    %37 = vector.broadcast %34 : vector<1x128xf32> to vector<2x128xf32>
    %38 = arith.addf %36, %37 : vector<2x128xf32>
    %c0_13 = arith.constant 0 : index
    %c0_14 = arith.constant 0 : index
    %39 = vector.load %arg3[%c0_13, %c0_14] : memref<2x128xf32, #tpu.memory_space<vmem>>, vector<2x128xf32>
    tpu.vector_store %arg3[%c0_13, %c0_14], %38 {strides = array<i32>} : memref<2x128xf32, #tpu.memory_space<vmem>>, vector<2x128xf32>,
    return
  }
}

</mosaic_0001>

<llo_original>
// kernel: cnn_text_forward.1
$region0: #{cnn_text_forward.1}
  #allocation0 [shape = 'u32[]', space=smem, size = 0x4, offset = 0x4, fixed_abs, tag = 'smem constant byte address 0x4 - core index']
  #allocation1 [shape = 'u32[144,128]{1,0:T(1,128)}', space=vmem, size = 0x12000, scoped, tag = 'internal scratch']
  %s0 = inlined_call_operand.vmem [shape: s32[2,24], index: 0, kind: input, shape index: {}]
  %s1 = inlined_call_operand.vmem [shape: f32[128,32], index: 1, kind: input, shape index: {}]
  %s2 = inlined_call_operand.hbm [shape: f32[320,128], index: 2, kind: input, shape index: {}]
  %s3 = inlined_call_operand.hbm [shape: f32[2,128], index: 3, kind: output, shape index: {}]
  %s4 = sld [smem:[#allocation0]]
  $region26: #{cnn_text_forward.1} parent=0
    _
  %s6 = ssub.s32 1, %s4
  %s7 = scalar_select 0, %s6, %s4
  $region1: #{cnn_text_forward.1} parent=0
    #allocation2 [shape = 'u8[163840]{0}', space=vmem, size = 0x28000, scoped, tag = 'input window, operand 2, single buffered']
    #allocation3 [shape = 's32[1]{0}', space=sflag, size = 0x4, scoped, tag = 'scoped memory for cnn_text_forward.1']
    #allocation4 [shape = 's32[1]{0}', space=sflag, size = 0x4, scoped, tag = 'scoped memory for cnn_text_forward.1']
    #allocation5 [shape = 'u8[1024]{0}', space=vmem, size = 0x400, scoped, tag = 'output window, operand 0, single buffered']
    %8 = vsyncpa [#allocation3], 0
    %9 = vsyncpa [#allocation4], 0
    // Predicated region
    $region2: #{cnn_text_forward.1} parent=1 // pred_check
      _
    $region3: #{cnn_text_forward.1} parent=1 // pred_check_branch
      %11 = sbr.rel (0) target = $region5
    $region4: #{cnn_text_forward.1} parent=1 // pred_region
      _
    $region5: #{cnn_text_forward.1} parent=1 // pred_fallthru
      _
    // Predicated region
    $region6: #{cnn_text_forward.1} parent=1 // pred_check
      _
    $region7: #{cnn_text_forward.1} parent=1 // pred_check_branch
      %13 = sbr.rel (0) target = $region9
    $region8: #{cnn_text_forward.1} parent=1 // pred_region
      _
    $region9: #{cnn_text_forward.1} parent=1 // pred_fallthru
      _
    // Predicated region
    $region10: #{cnn_text_forward.1} parent=1 // pred_check
      _
    $region11: #{cnn_text_forward.1} parent=1 // pred_check_branch
      %15 = sbr.rel (0) target = $region13
    $region12: #{cnn_text_forward.1} parent=1 // pred_region
      %s17 = ssub.s32 5120, 5120
      %18 = vsyncadd [#allocation3], %s17
      %s19 = sshll.u32 [#allocation2], 4
      %s20 = int_to_ptr.vmem [resolvable:$true] %s19
      %25 = dma.hbm_to_vmem [thread:$0]  %s2, 5120, %s20, [#allocation3], 128, 128, 8
    $region13: #{cnn_text_forward.1} parent=1 // pred_fallthru
      _
    // Predicated region
    $region14: #{cnn_text_forward.1} parent=1 // pred_check
      _
    $region15: #{cnn_text_forward.1} parent=1 // pred_check_branch
      %27 = sbr.rel (0) target = $region17
    $region16: #{cnn_text_forward.1} parent=1 // pred_region
      %28 = dma.done [#allocation3], 5120
    $region17: #{cnn_text_forward.1} parent=1 // pred_fallthru
      _
    %v30 = vld [vmem:[%s0] sm:$0x3]
    %v31 = vlaneseq
    %v32 = vand.u32 %v31, 127
    %v33 = vlaneseq
    %v34 = vshrl.u32 %v33, 7
    %v35 = vsub.s32 0, %v34
    %v36 = vrot.slane %v30, %v35
    %38 = vbcast.lane.b32.xlu0 %v36, 256
    %v39 = vpop.permute.xlu0 %38
    %s41 = sor.u32 256, 8
    %42 = vbcast.lane.b32.xlu0 %v36, %s41
    %v43 = vpop.permute.xlu0 %42
    %s45 = sor.u32 256, 16
    %46 = vbcast.lane.b32.xlu0 %v36, %s45
    %v47 = vpop.permute.xlu0 %46
    %v48 = vlaneseq
    %v49 = vshrl.u32 %v48, 7
    %v50 = vsub.s32 1, %v49
    %v51 = vrot.slane %v30, %v50
    %53 = vbcast.lane.b32.xlu0 %v51, 256
    %v54 = vpop.permute.xlu0 %53
    %s56 = sor.u32 256, 8
    %57 = vbcast.lane.b32.xlu0 %v51, %s56
    %v58 = vpop.permute.xlu0 %57
    %s60 = sor.u32 256, 16
    %61 = vbcast.lane.b32.xlu0 %v51, %s60
    %v62 = vpop.permute.xlu0 %61
    %vm63 = vcmp.eq.s32.totalorder %v32, %v39
    %vm64 = vcmp.eq.s32.totalorder %v32, %v43
    %vm65 = vcmp.eq.s32.totalorder %v32, %v47
    %vm66 = vcmp.eq.s32.totalorder %v32, %v54
    %vm67 = vcmp.eq.s32.totalorder %v32, %v58
    %vm68 = vcmp.eq.s32.totalorder %v32, %v62
    %v69 = vsel %vm63, 1, 0
    %v70 = vsel %vm64, 1, 0
    %v71 = vsel %vm65, 1, 0
    %v72 = vsel %vm66, 1, 0
    %v73 = vsel %vm67, 1, 0
    %v74 = vsel %vm68, 1, 0
    %v75 = vcvt.s32.f32 %v69
    %v76 = vcvt.s32.f32 %v70
    %v77 = vcvt.s32.f32 %v71
    %v78 = vcvt.s32.f32 %v72
    %v79 = vcvt.s32.f32 %v73
    %v80 = vcvt.s32.f32 %v74
    %v81 = vpack.c.bf16 %v76, %v75
    %v82 = vpack.c.bf16 %v77, %v77
    %v83 = vpack.c.bf16 %v79, %v78
    %v84 = vpack.c.bf16 %v80, %v80
    %v85 = vld [vmem:[%s1] sm:$0xff]
    %v86 = vld [vmem:[%s1 + $0x8] sm:$0xff]
    %v87 = vld [vmem:[%s1 + $0x10] sm:$0xff]
    %v88 = vld [vmem:[%s1 + $0x18] sm:$0xff]
    %v89 = vld [vmem:[%s1 + $0x20] sm:$0xff]
    %v90 = vld [vmem:[%s1 + $0x28] sm:$0xff]
    %v91 = vld [vmem:[%s1 + $0x30] sm:$0xff]
    %v92 = vld [vmem:[%s1 + $0x38] sm:$0xff]
    %v93 = vld [vmem:[%s1 + $0x40] sm:$0xff]
    %v94 = vld [vmem:[%s1 + $0x48] sm:$0xff]
    %v95 = vld [vmem:[%s1 + $0x50] sm:$0xff]
    %v96 = vld [vmem:[%s1 + $0x58] sm:$0xff]
    %v97 = vld [vmem:[%s1 + $0x60] sm:$0xff]
    %v98 = vld [vmem:[%s1 + $0x68] sm:$0xff]
    %v99 = vld [vmem:[%s1 + $0x70] sm:$0xff]
    %v100 = vld [vmem:[%s1 + $0x78] sm:$0xff]
    %v101 = vpack.c.bf16 %v86, %v85
    %v102 = vpack.c.bf16 %v88, %v87
    %v103 = vpack.c.bf16 %v90, %v89
    %v104 = vpack.c.bf16 %v92, %v91
    %v105 = vpack.c.bf16 %v94, %v93
    %v106 = vpack.c.bf16 %v96, %v95
    %v107 = vpack.c.bf16 %v98, %v97
    %v108 = vpack.c.bf16 %v100, %v99
    %v113 = vunpack.c.l.b16 %v81
    %v114 = vunpack.c.h.b16 %v81
    %v115 = vunpack.c.l.b16 %v82
    %v116 = vunpack.c.l.b16 %v83
    %v117 = vunpack.c.h.b16 %v83
    %v118 = vunpack.c.l.b16 %v84
    %v119 = vpack.c.b16 %v114, %v113
    %v120 = vpack.c.b16 %v116, %v115
    %v121 = vpack.c.b16 %v118, %v117
    %125 = vmatprep.subr.bf16.mxu0 0
    %126 = vmatpush1.bf16.msra.mxu0 %v101
    %127 = vmatprep.subr.bf16.mxu0 0
    %128 = vmatpush1.bf16.msra.mxu0 %v102
    %129 = vmatprep.subr.bf16.mxu0 0
    %130 = vmatpush1.bf16.msra.mxu0 %v103
    %131 = vmatprep.subr.bf16.mxu0 0
    %132 = vmatpush1.bf16.msra.mxu0 %v104
    %133 = vmatprep.subr.bf16.mxu0 0
    %134 = vmatpush1.bf16.msra.mxu0 %v105
    %135 = vmatprep.subr.bf16.mxu0 0
    %136 = vmatpush1.bf16.msra.mxu0 %v106
    %137 = vmatprep.subr.bf16.mxu0 0
    %138 = vmatpush1.bf16.msra.mxu0 %v107
    %139 = vmatprep.subr.bf16.mxu0 0
    %140 = vmatpush1.bf16.msra.mxu0 %v108
    %141 = vmatprep.subr.bf16.mxu0 0
    %142 = vmatpush1.bf16.msra.mxu0 0
    %143 = vmatprep.subr.bf16.mxu0 0
    %144 = vmatpush1.bf16.msra.mxu0 0
    %145 = vmatprep.subr.bf16.mxu0 0
    %146 = vmatpush1.bf16.msra.mxu0 0
    %147 = vmatprep.subr.bf16.mxu0 0
    %148 = vmatpush1.bf16.msra.mxu0 0
    %149 = vmatprep.subr.bf16.mxu0 0
    %150 = vmatpush1.bf16.msra.mxu0 0
    %151 = vmatprep.subr.bf16.mxu0 0
    %152 = vmatpush1.bf16.msra.mxu0 0
    %153 = vmatprep.subr.bf16.mxu0 0
    %154 = vmatpush1.bf16.msra.mxu0 0
    %155 = vmatprep.subr.bf16.mxu0 0
    %156 = vmatpush1.bf16.msra.mxu0 0
    %157 = vmatprep.mubr.bf16.mxu0 0
    %158 = vmatmul.mubr.bf16.gmra.mrb[0].mxu0 %v119
    %v159 = vpop.f32.mrb[0].mxu0
    %v160 = vadd.f32 0.0, %v159
    %v161 = vpop.f32.mrb[0].mxu0
    %v162 = vpop.f32.mrb[0].mxu0
    %v163 = vadd.f32 0.0, %v162
    %v164 = vpop.f32.mrb[0].mxu0
    %165 = vmatprep.mubr.bf16.mxu0 0
    %166 = vmatmul.mubr.bf16.gmra.mrb[0].mxu0 %v120
    %v167 = vpop.f32.mrb[0].mxu0
    %v168 = vadd.f32 0.0, %v167
    %v169 = vpop.f32.mrb[0].mxu0
    %v170 = vpop.f32.mrb[0].mxu0
    %v171 = vadd.f32 0.0, %v170
    %v172 = vpop.f32.mrb[0].mxu0
    %173 = vmatprep.mubr.bf16.mxu0 0
    %174 = vmatmul.mubr.bf16.gmra.mrb[0].mxu0 %v121
    %v175 = vpop.f32.mrb[0].mxu0
    %v176 = vadd.f32 0.0, %v175
    %v177 = vpop.f32.mrb[0].mxu0
    %v178 = vpop.f32.mrb[0].mxu0
    %v179 = vadd.f32 0.0, %v178
    %v180 = vpop.f32.mrb[0].mxu0
    %181 = vdwg.mxu0
    %vm188 = vcmask 1046528
    %v189 = vrot.slane %v160, 1
    %v190 = vrot.slane %v163, 1
    %v191 = vsel %vm188, %v189, %v190
    %v192 = vrot.slane %v168, 1
    %v193 = vsel %vm188, %v190, %v192
    %v194 = vrot.slane %v171, 1
    %v195 = vrot.slane %v176, 1
    %v196 = vsel %vm188, %v194, %v195
    %v197 = vrot.slane %v179, 1
    %v198 = vsel %vm188, %v195, %v197
    %199 = vrot.lane.b32.xlu0 %v191, 32
    %v200 = vpop.permute.xlu0 %199
    %201 = vrot.lane.b32.xlu0 %v193, 32
    %v202 = vpop.permute.xlu0 %201
    %203 = vrot.lane.b32.xlu0 %v196, 32
    %v204 = vpop.permute.xlu0 %203
    %205 = vrot.lane.b32.xlu0 %v198, 32
    %v206 = vpop.permute.xlu0 %205
    %vm211 = vcmask 1045504
    %v212 = vrot.slane %v160, 2
    %v213 = vrot.slane %v163, 2
    %v214 = vsel %vm211, %v212, %v213
    %v215 = vrot.slane %v168, 2
    %v216 = vsel %vm211, %v213, %v215
    %v217 = vrot.slane %v171, 2
    %v218 = vrot.slane %v176, 2
    %v219 = vsel %vm211, %v217, %v218
    %v220 = vrot.slane %v179, 2
    %v221 = vsel %vm211, %v218, %v220
    %222 = vrot.lane.b32.xlu0 %v214, 64
    %v223 = vpop.permute.xlu0 %222
    %224 = vrot.lane.b32.xlu0 %v216, 64
    %v225 = vpop.permute.xlu0 %224
    %226 = vrot.lane.b32.xlu0 %v219, 64
    %v227 = vpop.permute.xlu0 %226
    %228 = vrot.lane.b32.xlu0 %v221, 64
    %v229 = vpop.permute.xlu0 %228
    %vm234 = vcmask 1044480
    %v235 = vrot.slane %v160, 3
    %v236 = vrot.slane %v163, 3
    %v237 = vsel %vm234, %v235, %v236
    %v238 = vrot.slane %v168, 3
    %v239 = vsel %vm234, %v236, %v238
    %v240 = vrot.slane %v171, 3
    %v241 = vrot.slane %v176, 3
    %v242 = vsel %vm234, %v240, %v241
    %v243 = vrot.slane %v179, 3
    %v244 = vsel %vm234, %v241, %v243
    %245 = vrot.lane.b32.xlu0 %v237, 96
    %v246 = vpop.permute.xlu0 %245
    %247 = vrot.lane.b32.xlu0 %v239, 96
    %v248 = vpop.permute.xlu0 %247
    %249 = vrot.lane.b32.xlu0 %v242, 96
    %v250 = vpop.permute.xlu0 %249
    %251 = vrot.lane.b32.xlu0 %v244, 96
    %v252 = vpop.permute.xlu0 %251
    %vm257 = vcmask 1043456
    %v258 = vrot.slane %v160, 4
    %v259 = vrot.slane %v163, 4
    %v260 = vsel %vm257, %v258, %v259
    %v261 = vrot.slane %v168, 4
    %v262 = vsel %vm257, %v259, %v261
    %v263 = vrot.slane %v171, 4
    %v264 = vrot.slane %v176, 4
    %v265 = vsel %vm257, %v263, %v264
    %v266 = vrot.slane %v179, 4
    %v267 = vsel %vm257, %v264, %v266
    %vm272 = vcmask 261120
    %v273 = vsel %vm272, %v160, %v200
    %v274 = vsel %vm272, %v163, %v202
    %v275 = vsel %vm272, %v171, %v204
    %v276 = vsel %vm272, %v176, %v206
    %vm277 = vcmask 523264
    %v278 = vsel %vm277, %v273, %v223
    %v279 = vsel %vm277, %v274, %v225
    %v280 = vsel %vm277, %v275, %v227
    %v281 = vsel %vm277, %v276, %v229
    %vm282 = vcmask 785408
    %v283 = vsel %vm282, %v278, %v246
    %v284 = vsel %vm282, %v279, %v248
    %v285 = vsel %vm282, %v280, %v250
    %v286 = vsel %vm282, %v281, %v252
    %v287 = vld [vmem:[#allocation2] sm:$0xff]
    %v288 = vld [vmem:[#allocation2 + $0x8] sm:$0xff]
    %v289 = vld [vmem:[#allocation2 + $0x10] sm:$0xff]
    %v290 = vld [vmem:[#allocation2 + $0x18] sm:$0xff]
    %v291 = vld [vmem:[#allocation2 + $0x20] sm:$0xff]
    %v292 = vld [vmem:[#allocation2 + $0x28] sm:$0xff]
    %v293 = vld [vmem:[#allocation2 + $0x30] sm:$0xff]
    %v294 = vld [vmem:[#allocation2 + $0x38] sm:$0xff]
    %v295 = vld [vmem:[#allocation2 + $0x40] sm:$0xff]
    %v296 = vld [vmem:[#allocation2 + $0x48] sm:$0xff]
    %v297 = vld [vmem:[#allocation2 + $0x50] sm:$0xff]
    %v298 = vld [vmem:[#allocation2 + $0x58] sm:$0xff]
    %v299 = vld [vmem:[#allocation2 + $0x60] sm:$0xff]
    %v300 = vld [vmem:[#allocation2 + $0x68] sm:$0xff]
    %v301 = vld [vmem:[#allocation2 + $0x70] sm:$0xff]
    %v302 = vld [vmem:[#allocation2 + $0x78] sm:$0xff]
    %v303 = vld [vmem:[#allocation2 + $0x80] sm:$0xff]
    %v304 = vld [vmem:[#allocation2 + $0x88] sm:$0xff]
    %v305 = vld [vmem:[#allocation2 + $0x90] sm:$0xff]
    %v306 = vld [vmem:[#allocation2 + $0x98] sm:$0xff]
    %v307 = vpack.c.bf16 %v288, %v287
    %v308 = vpack.c.bf16 %v290, %v289
    %v309 = vpack.c.bf16 %v292, %v291
    %v310 = vpack.c.bf16 %v294, %v293
    %v311 = vpack.c.bf16 %v296, %v295
    %v312 = vpack.c.bf16 %v298, %v297
    %v313 = vpack.c.bf16 %v300, %v299
    %v314 = vpack.c.bf16 %v302, %v301
    %v315 = vpack.c.bf16 %v304, %v303
    %v316 = vpack.c.bf16 %v306, %v305
    %v317 = vld [vmem:[#allocation2 + $0xa0] sm:$0x1]
    %v318 = vpack.c.bf16 %v284, %v283
    %v319 = vpack.c.bf16 %v262, %v260
    %v320 = vpack.c.bf16 %v286, %v285
    %v321 = vpack.c.bf16 %v267, %v265
    %v322 = vlaneseq
    %v323 = vshrl.u32 %v322, 7
    %v324 = vsub.s32 0, %v323
    %v325 = vrot.slane %v317, %v324
    %v327 = vsel %vm272, %v319, 0
    %v330 = vsel %vm272, %v321, 0
    %332 = vmatprep.subr.bf16.mxu0 0
    %333 = vmatpush1.bf16.msra.mxu0 %v307
    %334 = vmatprep.subr.bf16.mxu0 0
    %335 = vmatpush1.bf16.msra.mxu0 %v308
    %336 = vmatprep.subr.bf16.mxu0 0
    %337 = vmatpush1.bf16.msra.mxu0 %v309
    %338 = vmatprep.subr.bf16.mxu0 0
    %339 = vmatpush1.bf16.msra.mxu0 %v310
    %340 = vmatprep.subr.bf16.mxu0 0
    %341 = vmatpush1.bf16.msra.mxu0 %v311
    %342 = vmatprep.subr.bf16.mxu0 0
    %343 = vmatpush1.bf16.msra.mxu0 %v312
    %344 = vmatprep.subr.bf16.mxu0 0
    %345 = vmatpush1.bf16.msra.mxu0 %v313
    %346 = vmatprep.subr.bf16.mxu0 0
    %347 = vmatpush1.bf16.msra.mxu0 %v314
    %348 = vmatprep.subr.bf16.mxu0 0
    %349 = vmatpush1.bf16.msra.mxu0 %v315
    %350 = vmatprep.subr.bf16.mxu0 0
    %351 = vmatpush1.bf16.msra.mxu0 %v316
    %352 = vmatprep.subr.bf16.mxu0 0
    %353 = vmatpush1.bf16.msra.mxu0 0
    %354 = vmatprep.subr.bf16.mxu0 0
    %355 = vmatpush1.bf16.msra.mxu0 0
    %356 = vmatprep.subr.bf16.mxu0 0
    %357 = vmatpush1.bf16.msra.mxu0 0
    %358 = vmatprep.subr.bf16.mxu0 0
    %359 = vmatpush1.bf16.msra.mxu0 0
    %360 = vmatprep.subr.bf16.mxu0 0
    %361 = vmatpush1.bf16.msra.mxu0 0
    %362 = vmatprep.subr.bf16.mxu0 0
    %363 = vmatpush1.bf16.msra.mxu0 0
    %364 = vmatprep.mubr.bf16.mxu0 %v327
    %365 = vmatmul.mubr.bf16.gmra.mrb[0].mxu0 %v318
    %v366 = vpop.f32.mrb[0].mxu0
    %v367 = vadd.f32 %v325, %v366
    %v368 = vpop.f32.mrb[0].mxu0
    %v369 = vpop.f32.mrb[0].mxu0
    %v370 = vadd.f32 %v325, %v369
    %v371 = vpop.f32.mrb[0].mxu0
    %372 = vmatprep.mubr.bf16.mxu0 %v330
    %373 = vmatmul.mubr.bf16.gmra.mrb[0].mxu0 %v320
    %v374 = vpop.f32.mrb[0].mxu0
    %v375 = vadd.f32 %v325, %v374
    %v376 = vpop.f32.mrb[0].mxu0
    %v377 = vpop.f32.mrb[0].mxu0
    %v378 = vadd.f32 %v325, %v377
    %v379 = vpop.f32.mrb[0].mxu0
    %380 = vdwg.mxu0
    %v381 = vmax.f32 %v367, 0.0
    %v382 = vmax.f32 %v370, 0.0
    %v383 = vmax.f32 %v375, 0.0
    %v384 = vmax.f32 %v378, 0.0
    %v385 = vld [vmem:[#allocation2 + $0x130] sm:$0xff]
    %v386 = vld [vmem:[#allocation2 + $0x138] sm:$0xff]
    %v387 = vmul.f32 %v381, %v385
    %v388 = vmul.f32 %v382, %v386
    %v389 = vmul.f32 %v383, %v385
    %v390 = vmul.f32 %v384, %v386
    %v391 = vmax.f32 %v387, %v388
    %v392 = vrot.slane %v391, 4
    %v393 = vmax.f32 %v391, %v392
    %v394 = vrot.slane %v393, 2
    %v395 = vmax.f32 %v393, %v394
    %v396 = vrot.slane %v395, 1
    %v397 = vmax.f32 %v395, %v396
    %v398 = vmax.f32 %v389, %v390
    %v399 = vrot.slane %v398, 4
    %v400 = vmax.f32 %v398, %v399
    %v401 = vrot.slane %v400, 2
    %v402 = vmax.f32 %v400, %v401
    %v403 = vrot.slane %v402, 1
    %v404 = vmax.f32 %v402, %v403
    %v405 = vld [vmem:[#allocation2 + $0xa8] sm:$0xff]
    %v406 = vld [vmem:[#allocation2 + $0xb0] sm:$0xff]
    %v407 = vld [vmem:[#allocation2 + $0xb8] sm:$0xff]
    %v408 = vld [vmem:[#allocation2 + $0xc0] sm:$0xff]
    %v409 = vld [vmem:[#allocation2 + $0xc8] sm:$0xff]
    %v410 = vld [vmem:[#allocation2 + $0xd0] sm:$0xff]
    %v411 = vld [vmem:[#allocation2 + $0xd8] sm:$0xff]
    %v412 = vld [vmem:[#allocation2 + $0xe0] sm:$0xff]
    %v413 = vld [vmem:[#allocation2 + $0xe8] sm:$0xff]
    %v414 = vld [vmem:[#allocation2 + $0xf0] sm:$0xff]
    %v415 = vld [vmem:[#allocation2 + $0xf8] sm:$0xff]
    %v416 = vld [vmem:[#allocation2 + $0x100] sm:$0xff]
    %v417 = vld [vmem:[#allocation2 + $0x108] sm:$0xff]
    %v418 = vld [vmem:[#allocation2 + $0x110] sm:$0xff]
    %v419 = vld [vmem:[#allocation2 + $0x118] sm:$0xff]
    %v420 = vld [vmem:[#allocation2 + $0x120] sm:$0xff]
    %v421 = vpack.c.bf16 %v406, %v405
    %v422 = vpack.c.bf16 %v408, %v407
    %v423 = vpack.c.bf16 %v410, %v409
    %v424 = vpack.c.bf16 %v412, %v411
    %v425 = vpack.c.bf16 %v414, %v413
    %v426 = vpack.c.bf16 %v416, %v415
    %v427 = vpack.c.bf16 %v418, %v417
    %v428 = vpack.c.bf16 %v420, %v419
    %v429 = vld [vmem:[#allocation2 + $0x128] sm:$0x1]
    %v430 = vpack.c.bf16 %v397, %v397
    %v431 = vpack.c.bf16 %v404, %v404
    %v432 = vlaneseq
    %v433 = vshrl.u32 %v432, 7
    %v434 = vsub.s32 0, %v433
    %v435 = vrot.slane %v429, %v434
    %v438 = vunpack.c.l.b16 %v430
    %v439 = vunpack.c.l.b16 %v431
    %vm440 = vcmask 1041409
    %v441 = vsel %vm440, %v439, %v438
    %v442 = vpack.c.b16 %v441, %v441
    %444 = vmatprep.subr.bf16.mxu0 0
    %445 = vmatpush1.bf16.msra.mxu0 %v421
    %446 = vmatprep.subr.bf16.mxu0 0
    %447 = vmatpush1.bf16.msra.mxu0 %v422
    %448 = vmatprep.subr.bf16.mxu0 0
    %449 = vmatpush1.bf16.msra.mxu0 %v423
    %450 = vmatprep.subr.bf16.mxu0 0
    %451 = vmatpush1.bf16.msra.mxu0 %v424
    %452 = vmatprep.subr.bf16.mxu0 0
    %453 = vmatpush1.bf16.msra.mxu0 %v425
    %454 = vmatprep.subr.bf16.mxu0 0
    %455 = vmatpush1.bf16.msra.mxu0 %v426
    %456 = vmatprep.subr.bf16.mxu0 0
    %457 = vmatpush1.bf16.msra.mxu0 %v427
    %458 = vmatprep.subr.bf16.mxu0 0
    %459 = vmatpush1.bf16.msra.mxu0 %v428
    %460 = vmatprep.subr.bf16.mxu0 0
    %461 = vmatpush1.bf16.msra.mxu0 0
    %462 = vmatprep.subr.bf16.mxu0 0
    %463 = vmatpush1.bf16.msra.mxu0 0
    %464 = vmatprep.subr.bf16.mxu0 0
    %465 = vmatpush1.bf16.msra.mxu0 0
    %466 = vmatprep.subr.bf16.mxu0 0
    %467 = vmatpush1.bf16.msra.mxu0 0
    %468 = vmatprep.subr.bf16.mxu0 0
    %469 = vmatpush1.bf16.msra.mxu0 0
    %470 = vmatprep.subr.bf16.mxu0 0
    %471 = vmatpush1.bf16.msra.mxu0 0
    %472 = vmatprep.subr.bf16.mxu0 0
    %473 = vmatpush1.bf16.msra.mxu0 0
    %474 = vmatprep.subr.bf16.mxu0 0
    %475 = vmatpush1.bf16.msra.mxu0 0
    %476 = vmatprep.mubr.bf16.mxu0 0
    %477 = vmatmul.mubr.bf16.gmra.mrb[0].mxu0 %v442
    %v478 = vpop.f32.mrb[0].mxu0
    %v479 = vadd.f32 %v435, %v478
    %v480 = vpop.f32.mrb[0].mxu0
    %v481 = vpop.f32.mrb[0].mxu0
    %v482 = vpop.f32.mrb[0].mxu0
    %483 = vdwg.mxu0
    %484 = vst [vmem:[#allocation5] sm:$0x3] %v479
    // Predicated region
    $region18: #{cnn_text_forward.1} parent=1 // pred_check
      _
    $region19: #{cnn_text_forward.1} parent=1 // pred_check_branch
      %486 = sbr.rel (0) target = $region21
    $region20: #{cnn_text_forward.1} parent=1 // pred_region
      %s488 = ssub.s32 32, 32
      %489 = vsyncadd [#allocation4], %s488
      %s491 = sshll.u32 [#allocation5], 4
      %s492 = int_to_ptr.vmem [resolvable:$true] %s491
      %494 = dma.vmem_to_hbm [thread:$0]  %s492, 32, %s3, [#allocation4]
    $region21: #{cnn_text_forward.1} parent=1 // pred_fallthru
      _
    // Predicated region
    $region22: #{cnn_text_forward.1} parent=1 // pred_check
      _
    $region23: #{cnn_text_forward.1} parent=1 // pred_check_branch
      %496 = sbr.rel (0) target = $region25
    $region24: #{cnn_text_forward.1} parent=1 // pred_region
      %497 = dma.done [#allocation4], 32
    $region25: #{cnn_text_forward.1} parent=1 // pred_fallthru
      _
    %498 = vsyncpa [#allocation3], 1
    %499 = vsyncpa [#allocation4], 1

</llo_original>
